<compile_context>
chip_gen: v6e
topology: v6e:2x2x1
jax: 0.10.0
libtpu: 0.0.40
codegen_flags: <defaults>
</compile_context>

<pallas_src>
import functools
import math

import jax
import jax.numpy as jnp
from jax.experimental import pallas as pl
from jax.experimental.pallas import tpu as pltpu


# ------------------------------ VMEM budgeting ---------------------------------

def _vmem_limit_bytes():
    """Per-TensorCore scoped-VMEM budget: 3/4 of physical capacity, capped at 100 MiB.

    v5e/v6e have 128 MiB physical per TC (scoped defaults of 16/32 MiB are far too
    small for resident bf16 block weights + double-buffered layer prefetch); v7x
    has 64 MiB per TC, so the 3/4 rule keeps us under budget there as well.
    """
    cap = 128 * 1024 * 1024
    try:
        cap = int(pltpu.get_tpu_info().vmem_capacity_bytes)
    except Exception:
        pass
    return int(min(cap * 3 // 4, 100 * 1024 * 1024))


# ------------------------- in-kernel helper functions ---------------------------

def _layernorm(x, g, b, eps=1e-5):
    mu = jnp.mean(x, axis=-1, keepdims=True)
    xc = x - mu
    var = jnp.mean(xc * xc, axis=-1, keepdims=True)
    return xc * jax.lax.rsqrt(var + eps) * g + b


def _mm(a, b):
    # MXU matmul: bf16 operands (weights are already stored bf16, so astype on the
    # weight side is a no-op), f32 accumulation (native on v5e/v6e/v7x MXUs).
    return jnp.dot(a.astype(jnp.bfloat16), b.astype(jnp.bfloat16),
                   preferred_element_type=jnp.float32)


# ------------------------------ Pallas kernels ----------------------------------

def _matmul_kernel(a_ref, b_ref, o_ref):
    o_ref[...] = _mm(a_ref[...], b_ref[...])


def pallas_matmul(a, b, tm=512):
    """(M, K) @ (K, N) -> (M, N) f32.  Tiled over M ("parallel"); weight tile resident."""
    M, K = a.shape
    _, N = b.shape
    tm = min(tm, M)
    if M % tm:
        tm = M  # TODO(synk): pad/ragged M handling for production patch counts.
    return pl.pallas_call(
        _matmul_kernel,
        out_shape=jax.ShapeDtypeStruct((M, N), jnp.float32),
        grid=(M // tm,),
        in_specs=[pl.BlockSpec((tm, K), lambda i: (i, 0)),
                  pl.BlockSpec((K, N), lambda i: (0, 0))],
        out_specs=pl.BlockSpec((tm, N), lambda i: (i, 0)),
        compiler_params=pltpu.CompilerParams(
            dimension_semantics=("parallel",),
            vmem_limit_bytes=_vmem_limit_bytes()),
    )(a, b)


def _posln_kernel(x_ref, pos_ref, g_ref, b_ref, o_ref):
    # positional-embedding add fused with ln_pre
    o_ref[0] = _layernorm(x_ref[0] + pos_ref[...], g_ref[...], b_ref[...])


def pallas_posemb_ln(x, pos, g, b):
    """x: (B, T, D); returns ln_pre(x + pos), fused in one kernel, grid over B."""
    B, T, D = x.shape
    x_spec = pl.BlockSpec((1, T, D), lambda i: (i, 0, 0))
    return pl.pallas_call(
        _posln_kernel,
        out_shape=jax.ShapeDtypeStruct((B, T, D), jnp.float32),
        grid=(B,),
        in_specs=[x_spec,
                  pl.BlockSpec((T, D), lambda i: (0, 0)),
                  pl.BlockSpec((1, D), lambda i: (0, 0)),
                  pl.BlockSpec((1, D), lambda i: (0, 0))],
        out_specs=x_spec,
        compiler_params=pltpu.CompilerParams(dimension_semantics=("parallel",)),
    )(x, pos, g.reshape(1, D), b.reshape(1, D))


def _tower_block_kernel(x_ref, ln1g_ref, ln1b_ref, wqkv_ref, bqkv_ref,
                        wo_ref, bo_ref, ln2g_ref, ln2b_ref,
                        wfc_ref, bfc_ref, wpr_ref, bpr_ref,
                        o_ref, attn_scr, *, heads, causal):
    """One pre-norm CLIP residual block; grid = (batch, layer).

    The residual stream lives in the resident output block (same output block
    index for every layer step), initialized from the input block at layer 0.
    """
    @pl.when(pl.program_id(1) == 0)
    def _():
        o_ref[...] = x_ref[...]

    x = o_ref[0]                                   # (T, D) f32, resident across layers
    T, D = x.shape
    Dh = D // heads
    scale = 1.0 / math.sqrt(Dh)

    # ---- LN1 + fused QKV projection (bf16 weights, f32 accumulate) ----
    h = _layernorm(x, ln1g_ref[0], ln1b_ref[0])
    qkv = _mm(h, wqkv_ref[0]) + bqkv_ref[0]        # (T, 3D)

    if causal:
        row = jax.lax.broadcasted_iota(jnp.int32, (T, T), 0)
        col = jax.lax.broadcasted_iota(jnp.int32, (T, T), 1)
        bias = jnp.where(col <= row, 0.0, -1e30)   # single additive bias, reused per head

    # ---- per-head attention; each head writes straight into the (T, D) scratch
    #      slab at its lane offset (no concat, no all-heads-live spill) ----
    # TODO(synk): at ViT-L production sizes (Dh=64, 16 heads), pack head groups so
    # the score/value matmuls are 128-lane aligned / 128-wide MXU tiles.
    for hd in range(heads):
        q = qkv[:, hd * Dh:(hd + 1) * Dh] * scale              # fold 1/sqrt(Dh) into q
        k = qkv[:, D + hd * Dh:D + (hd + 1) * Dh]
        v = qkv[:, 2 * D + hd * Dh:2 * D + (hd + 1) * Dh]
        s = _mm(q, k.T)                                        # (T, T) f32
        if causal:
            s = s + bias
        s = s - jnp.max(s, axis=-1, keepdims=True)
        p = jnp.exp(s)
        p = p * pl.reciprocal(jnp.sum(p, axis=-1, keepdims=True), approx=True)
        attn_scr[:, hd * Dh:(hd + 1) * Dh] = _mm(p, v)         # (T, Dh) -> slab slice

    # ---- output projection + residual add (fused) ----
    x = x + _mm(attn_scr[...], wo_ref[0]) + bo_ref[0]

    # ---- LN2 + QuickGELU MLP + residual add (fused) ----
    # TODO(synk): on v7x (64 MiB VMEM/TC) at ViT-L sizes, stream fc_w/proj_w in
    # 512-1024 column/row chunks with an f32 accumulator instead of full residency.
    h = _layernorm(x, ln2g_ref[0], ln2b_ref[0])
    m = _mm(h, wfc_ref[0]) + bfc_ref[0]
    m = m * jax.nn.sigmoid(1.702 * m)                          # QuickGELU
    m = _mm(m, wpr_ref[0]) + bpr_ref[0]
    o_ref[0] = (x + m).astype(o_ref.dtype)


def pallas_transformer_tower(x, p, heads, causal):
    """x: (B, T, D).  Whole L-layer tower as ONE pallas_call, grid = (B, L).

    Layer-stacked weights are selected by the inner ("arbitrary") grid axis, so
    the pipeline prefetches layer l+1 weights while layer l computes.
    """
    B, T, D = x.shape
    L = p["attn_in_w"].shape[0]

    x_spec = pl.BlockSpec((1, T, D), lambda b, l: (b, 0, 0))

    def lspec(arr):
        nd = arr.ndim
        return pl.BlockSpec((1,) + arr.shape[1:],
                            lambda b, l, _nd=nd: (l,) + (0,) * (_nd - 1))

    weights = [p["ln1_g"], p["ln1_b"],
               p["attn_in_w"], p["attn_in_b"],
               p["attn_out_w"], p["attn_out_b"],
               p["ln2_g"], p["ln2_b"],
               p["fc_w"], p["fc_b"],
               p["proj_w"], p["proj_b"]]

    return pl.pallas_call(
        functools.partial(_tower_block_kernel, heads=heads, causal=causal),
        out_shape=jax.ShapeDtypeStruct((B, T, D), jnp.float32),
        grid=(B, L),
        in_specs=[x_spec] + [lspec(w) for w in weights],
        out_specs=x_spec,
        scratch_shapes=[pltpu.VMEM((T, D), jnp.float32)],       # attention output slab
        compiler_params=pltpu.CompilerParams(
            dimension_semantics=("parallel", "arbitrary"),
            vmem_limit_bytes=_vmem_limit_bytes()),
    )(x, *weights)


def _ln_proj_kernel(x_ref, g_ref, b_ref, w_ref, o_ref):
    h = _layernorm(x_ref[...], g_ref[...], b_ref[...])
    o_ref[...] = _mm(h, w_ref[...])


def pallas_ln_proj(x, g, b, w):
    """Fused final layernorm + projection head.  x: (M, D) -> (M, E)."""
    M, D = x.shape
    _, E = w.shape
    return pl.pallas_call(
        _ln_proj_kernel,
        out_shape=jax.ShapeDtypeStruct((M, E), jnp.float32),
    )(x, g.reshape(1, D), b.reshape(1, D), w)


def _reward_kernel(eb_ref, ew_ref, et_ref, scale_ref, o_ref):
    scale = scale_ref[0]                                       # SMEM scalar

    def l2norm(v):
        return v * jax.lax.rsqrt(jnp.sum(v * v, axis=1, keepdims=True) + 1e-12)

    nb = l2norm(eb_ref[...])
    nw = l2norm(ew_ref[...])
    nt = l2norm(et_ref[...])
    # diag(logit_scale * emb @ emb_text.T) == row-wise scaled dot products
    better = scale * jnp.sum(nb * nt, axis=1, keepdims=True)
    worse = scale * jnp.sum(nw * nt, axis=1, keepdims=True)
    o_ref[...] = jnp.concatenate([better, worse], axis=1)


def pallas_rewards(emb_better, emb_worse, emb_text, logit_scale):
    B, _ = emb_better.shape
    vmem = pl.BlockSpec(memory_space=pltpu.MemorySpace.VMEM)
    smem = pl.BlockSpec(memory_space=pltpu.MemorySpace.SMEM)
    # TODO(synk): could fold into pallas_ln_proj's epilogue if B grows (saves a launch).
    return pl.pallas_call(
        _reward_kernel,
        out_shape=jax.ShapeDtypeStruct((B, 2), jnp.float32),
        in_specs=[vmem, vmem, vmem, smem],
        out_specs=vmem,
    )(emb_better, emb_worse, emb_text, logit_scale.reshape(1))


# --------------------------------- encoders -------------------------------------

def encode_image(img, P, cfg):
    # layout: img is NCHW (B, 3, H, W); patch-embed conv == patch-flatten + matmul.
    B, C, H, W = img.shape
    p = cfg["patch"]
    gh, gw = H // p, W // p
    D = cfg["img_width"]

    patches = (img.reshape(B, C, gh, p, gw, p)
                  .transpose(0, 2, 4, 1, 3, 5)
                  .reshape(B * gh * gw, C * p * p))
    x = pallas_matmul(patches, P["conv1_w"]).reshape(B, gh * gw, D)

    cls = jnp.broadcast_to(P["class_emb"].reshape(1, 1, D), (B, 1, D))
    x = jnp.concatenate([cls, x], axis=1)                      # (B, T, D)

    # positional-embedding add + ln_pre fused in one kernel
    x = pallas_posemb_ln(x, P["vis_pos"], P["ln_pre_g"], P["ln_pre_b"])

    # whole image tower in one pallas_call (layer-stacked weights, cross-layer prefetch)
    x = pallas_transformer_tower(x, P["vis_blocks"], cfg["img_heads"], causal=False)

    # CLS pooling, then fused ln_post + visual projection
    return pallas_ln_proj(x[:, 0, :], P["ln_post_g"], P["ln_post_b"], P["vis_proj"])


def encode_text(tokens, P, cfg):
    B, T = tokens.shape
    D = cfg["txt_width"]
    # TODO(synk): token-embedding gather has no clean tiled-Pallas equivalent at
    # these shapes; it stays as a host-side jnp.take.
    x = jnp.take(P["tok_emb"], tokens, axis=0) + P["txt_pos"][None]

    x = pallas_transformer_tower(x, P["txt_blocks"], cfg["txt_heads"], causal=True)

    # EOT pooling; layernorm is per-token, so gather-then-LN == LN-then-gather.
    eot = jnp.argmax(tokens, axis=-1)
    x = x[jnp.arange(B), eot]                                  # (B, D)
    return pallas_ln_proj(x, P["ln_final_g"], P["ln_final_b"], P["text_proj"])


def clip_reward_v2_forward(batch_data, P, cfg):
    img_better = batch_data["img_better"]
    img_worse = batch_data["img_worse"]
    text_tokens = jnp.squeeze(batch_data["clip_text"], axis=1)  # squeeze(dim=1)
    B = img_better.shape[0]

    # Run both image batches through the tower in a single pass.
    imgs = jnp.concatenate([img_better, img_worse], axis=0)     # (2B, 3, H, W)
    emb_img = encode_image(imgs, P, cfg)                        # (2B, E)
    emb_better, emb_worse = emb_img[:B], emb_img[B:]
    emb_text = encode_text(text_tokens, P, cfg)                 # (B, E)

    logit_scale = jnp.exp(P["logit_scale"])
    # normalization + diag(logit_scale * emb @ emb_text.T) + cat → (B, 2)
    return pallas_rewards(emb_better, emb_worse, emb_text, logit_scale)


# ------------------------------ parameter init -----------------------------------

def init_params(key, cfg):
    D = cfg["img_width"]
    Dt = cfg["txt_width"]
    E = cfg["embed_dim"]
    p = cfg["patch"]
    gh = cfg["image_size"] // p

    keys = iter(jax.random.split(key, 256))

    def nrm(shape, std=0.02):
        return std * jax.random.normal(next(keys), shape, dtype=jnp.float32)

    def stacked_blocks(Dm, L):
        # Layer-stacked weights; big matmul weights stored bf16 (halves DMA/VMEM),
        # LN params and biases stay f32.
        return dict(
            ln1_g=jnp.ones((L, 1, Dm), jnp.float32),
            ln1_b=jnp.zeros((L, 1, Dm), jnp.float32),
            attn_in_w=nrm((L, Dm, 3 * Dm)).astype(jnp.bfloat16),
            attn_in_b=jnp.zeros((L, 1, 3 * Dm), jnp.float32),
            attn_out_w=nrm((L, Dm, Dm)).astype(jnp.bfloat16),
            attn_out_b=jnp.zeros((L, 1, Dm), jnp.float32),
            ln2_g=jnp.ones((L, 1, Dm), jnp.float32),
            ln2_b=jnp.zeros((L, 1, Dm), jnp.float32),
            fc_w=nrm((L, Dm, 4 * Dm)).astype(jnp.bfloat16),
            fc_b=jnp.zeros((L, 1, 4 * Dm), jnp.float32),
            proj_w=nrm((L, 4 * Dm, Dm)).astype(jnp.bfloat16),
            proj_b=jnp.zeros((L, 1, Dm), jnp.float32),
        )

    # TODO(synk): real CLIP loads pretrained ViT-L/14 weights; here params are synthetic.
    return dict(
        conv1_w=nrm((3 * p * p, D)).astype(jnp.bfloat16),
        class_emb=nrm((D,)),
        vis_pos=nrm((gh * gh + 1, D)),
        ln_pre_g=jnp.ones((D,), jnp.float32), ln_pre_b=jnp.zeros((D,), jnp.float32),
        vis_blocks=stacked_blocks(D, cfg["img_layers"]),
        ln_post_g=jnp.ones((D,), jnp.float32), ln_post_b=jnp.zeros((D,), jnp.float32),
        vis_proj=nrm((D, E)).astype(jnp.bfloat16),
        tok_emb=nrm((cfg["vocab"], Dt)),
        txt_pos=nrm((cfg["context"], Dt)),
        txt_blocks=stacked_blocks(Dt, cfg["txt_layers"]),
        ln_final_g=jnp.ones((Dt,), jnp.float32), ln_final_b=jnp.zeros((Dt,), jnp.float32),
        text_proj=nrm((Dt, E)).astype(jnp.bfloat16),
        logit_scale=jnp.asarray(math.log(1.0 / 0.07), jnp.float32),
    )


# ------------------------------------ main ----------------------------------------

if __name__ == "__main__":
    cfg = dict(image_size=16, patch=4, img_width=32, img_layers=2, img_heads=2,
               context=8, vocab=64, txt_width=32, txt_layers=2, txt_heads=2,
               embed_dim=32)

    key = jax.random.PRNGKey(0)
    kp, ki1, ki2, kt = jax.random.split(key, 4)
    P = init_params(kp, cfg)

    B = 2
    img_better = jax.random.normal(ki1, (B, 3, cfg["image_size"], cfg["image_size"]),
                                   dtype=jnp.float32)
    img_worse = jax.random.normal(ki2, (B, 3, cfg["image_size"], cfg["image_size"]),
                                  dtype=jnp.float32)
    clip_text = jax.random.randint(kt, (B, 1, cfg["context"]), 0, cfg["vocab"],
                                   dtype=jnp.int32)

    batch_data = dict(img_better=img_better, img_worse=img_worse, clip_text=clip_text)

    rewards = clip_reward_v2_forward(batch_data, P, cfg)
    rewards = jax.block_until_ready(rewards)

    assert rewards.shape == (B, 2), rewards.shape
    assert rewards.dtype == jnp.float32
    assert bool(jnp.all(jnp.isfinite(rewards)))
    print("KERNEL_OK")
</pallas_src>

<mosaic_0001>
module attributes {stable_mosaic.version = 11 : i64} {
  func.func @_matmul_kernel(%arg0: i32, %arg1: memref<64x48xf32, #tpu.memory_space<vmem>>, %arg2: memref<48x32xbf16, #tpu.memory_space<vmem>>, %arg3: memref<64x32xf32, #tpu.memory_space<vmem>>) attributes {dimension_semantics = [#tpu.dimension_semantics<parallel>], iteration_bounds = array<i64: 1>, scalar_prefetch = 0 : i64, scratch_operands = 0 : i64, tpu.core_type = #tpu.core_type<tc>, window_params = [{transform_indices = @transform_0, window_bounds = array<i64: 64, 48>}, {pipeline_mode = #tpu.pipeline_mode<synchronous>, transform_indices = @transform_1, window_bounds = array<i64: 48, 32>}, {transform_indices = @transform_2, window_bounds = array<i64: 64, 32>}]} {
    %c0 = arith.constant 0 : index
    %c0_0 = arith.constant 0 : index
    %0 = vector.load %arg1[%c0, %c0_0] : memref<64x48xf32, #tpu.memory_space<vmem>>, vector<64x48xf32>
    %c0_1 = arith.constant 0 : index
    %c0_2 = arith.constant 0 : index
    %1 = vector.load %arg2[%c0_1, %c0_2] : memref<48x32xbf16, #tpu.memory_space<vmem>>, vector<48x32xbf16>
    %2 = arith.truncf %0 : vector<64x48xf32> to vector<64x48xbf16>
    %cst = arith.constant dense<0.000000e+00> : vector<64x32xf32>
    %3 = tpu.matmul %2, %1, %cst {dimension_numbers = #tpu.dot_dimension_numbers<[1], [0], [0], [1], [0, 0, 1, 1], [], []>} : vector<64x48xbf16>, vector<48x32xbf16>, vector<64x32xf32> -> vector<64x32xf32>
    %c0_3 = arith.constant 0 : index
    %c0_4 = arith.constant 0 : index
    %4 = vector.load %arg3[%c0_3, %c0_4] : memref<64x32xf32, #tpu.memory_space<vmem>>, vector<64x32xf32>
    tpu.vector_store %arg3[%c0_3, %c0_4], %3 {strides = array<i32>} : memref<64x32xf32, #tpu.memory_space<vmem>>, vector<64x32xf32>,
    return
  }
  func.func @transform_0(%arg0: i32) -> (i32, i32) {
    %c0_i32 = arith.constant 0 : i32
    %c0_i32_0 = arith.constant 0 : i32
    return %arg0, %c0_i32 : i32, i32
  }
  func.func @transform_1(%arg0: i32) -> (i32, i32) {
    %c0_i32 = arith.constant 0 : i32
    %c0_i32_0 = arith.constant 0 : i32
    %c0_i32_1 = arith.constant 0 : i32
    return %c0_i32, %c0_i32_0 : i32, i32
  }
  func.func @transform_2(%arg0: i32) -> (i32, i32) {
    %c0_i32 = arith.constant 0 : i32
    %c0_i32_0 = arith.constant 0 : i32
    return %arg0, %c0_i32 : i32, i32
  }
}

</mosaic_0001>

<llo_original>
// kernel: tpu_custom_call.1
$region0: #{tpu_custom_call.1}
  #allocation0 [shape = 'u32[]', space=smem, size = 0x4, offset = 0x4, fixed_abs, tag = 'smem constant byte address 0x4 - core index']
  #allocation1 [shape = 'u32[144,128]{1,0:T(1,128)}', space=vmem, size = 0x12000, scoped, tag = 'internal scratch']
  %s0 = inlined_call_operand.vmem [shape: f32[64,48], index: 0, kind: input, shape index: {}]
  %s1 = inlined_call_operand.vmem [shape: bf16[48,32], index: 1, kind: input, shape index: {}]
  %s2 = inlined_call_operand.vmem [shape: f32[64,32], index: 2, kind: output, shape index: {}]
  %s3 = sld [smem:[#allocation0]]
  $region18: #{tpu_custom_call.1} parent=0
    _
  %s5 = ssub.s32 1, %s3
  %s6 = scalar_select 0, %s5, %s3
  // Predicated region
  $region2: #{tpu_custom_call.1} parent=0 // pred_check
    _
  $region3: #{tpu_custom_call.1} parent=0 // pred_check_branch
    %8 = sbr.rel (0) target = $region5
  $region4: #{tpu_custom_call.1} parent=0 // pred_region
    _
  $region5: #{tpu_custom_call.1} parent=0 // pred_fallthru
    _
  // Predicated region
  $region6: #{tpu_custom_call.1} parent=0 // pred_check
    _
  $region7: #{tpu_custom_call.1} parent=0 // pred_check_branch
    %10 = sbr.rel (0) target = $region9
  $region8: #{tpu_custom_call.1} parent=0 // pred_region
    _
  $region9: #{tpu_custom_call.1} parent=0 // pred_fallthru
    _
  %v12 = vld [vmem:[%s0] sm:$0xff]
  %v13 = vld [vmem:[%s0 + $0x8] sm:$0xff]
  %v14 = vld [vmem:[%s0 + $0x10] sm:$0xff]
  %v15 = vld [vmem:[%s0 + $0x18] sm:$0xff]
  %v16 = vld [vmem:[%s0 + $0x20] sm:$0xff]
  %v17 = vld [vmem:[%s0 + $0x28] sm:$0xff]
  %v18 = vld [vmem:[%s0 + $0x30] sm:$0xff]
  %v19 = vld [vmem:[%s0 + $0x38] sm:$0xff]
  %v20 = vld [vmem:[%s1] sm:$0xf]
  %v21 = vld [vmem:[%s1 + $0x4] sm:$0xf]
  %v22 = vld [vmem:[%s1 + $0x8] sm:$0xf]
  %v23 = vld [vmem:[%s1 + $0xc] sm:$0xf]
  %v24 = vld [vmem:[%s1 + $0x10] sm:$0xf]
  %v25 = vld [vmem:[%s1 + $0x14] sm:$0xf]
  %v26 = vpack.c.bf16 %v13, %v12
  %v27 = vpack.c.bf16 %v15, %v14
  %v28 = vpack.c.bf16 %v17, %v16
  %v29 = vpack.c.bf16 %v19, %v18
  %v36 = vunpack.c.l.b16 %v20
  %v37 = vunpack.c.l.b16 %v21
  %v38 = vunpack.c.l.b16 %v22
  %v39 = vunpack.c.l.b16 %v23
  %v40 = vunpack.c.l.b16 %v24
  %v41 = vunpack.c.l.b16 %v25
  %v42 = vpack.c.b16 %v37, %v36
  %v43 = vpack.c.b16 %v39, %v38
  %v44 = vpack.c.b16 %v41, %v40
  %vm48 = vcmask 392192
  %v50 = vsel %vm48, %v26, 0
  %v53 = vsel %vm48, %v27, 0
  %v56 = vsel %vm48, %v28, 0
  %v59 = vsel %vm48, %v29, 0
  %61 = vmatprep.subr.bf16.mxu0 0
  %62 = vmatpush1.bf16.msra.mxu0 0
  %63 = vmatprep.subr.bf16.mxu0 0
  %64 = vmatpush1.bf16.msra.mxu0 0
  %65 = vmatprep.subr.bf16.mxu0 0
  %66 = vmatpush1.bf16.msra.mxu0 0
  %67 = vmatprep.subr.bf16.mxu0 0
  %68 = vmatpush1.bf16.msra.mxu0 0
  %69 = vmatprep.subr.bf16.mxu0 0
  %70 = vmatpush1.bf16.msra.mxu0 0
  %71 = vmatprep.subr.bf16.mxu0 0
  %72 = vmatpush1.bf16.msra.mxu0 %v44
  %73 = vmatprep.subr.bf16.mxu0 0
  %74 = vmatpush1.bf16.msra.mxu0 %v43
  %75 = vmatprep.subr.bf16.mxu0 0
  %76 = vmatpush1.bf16.msra.mxu0 %v42
  %77 = vmatprep.subr.bf16.mxu0 0
  %78 = vmatpush2.bf16.msra.mxu0 0
  %79 = vmatprep.subr.bf16.mxu0 0
  %80 = vmatpush2.bf16.msra.mxu0 0
  %81 = vmatprep.subr.bf16.mxu0 0
  %82 = vmatpush2.bf16.msra.mxu0 0
  %83 = vmatprep.subr.bf16.mxu0 0
  %84 = vmatpush2.bf16.msra.mxu0 0
  %85 = vmatprep.subr.bf16.mxu0 0
  %86 = vmatpush2.bf16.msra.mxu0 0
  %87 = vmatprep.subr.bf16.mxu0 0
  %88 = vmatpush2.bf16.msra.mxu0 0
  %89 = vmatprep.subr.bf16.mxu0 0
  %90 = vmatpush2.bf16.msra.mxu0 0
  %91 = vmatprep.subr.bf16.mxu0 0
  %92 = vmatpush2.bf16.msra.mxu0 0
  %93 = vmatprep.mubr.bf16.mxu0 0
  %94 = vmatmul.mubr.bf16.gmra.mxu0 %v50
  %v95 = vpop.f32.mrf.mxu0
  %v96 = vadd.f32 0.0, %v95
  %v97 = vpop.f32.mrf.mxu0
  %v98 = vpop.f32.mrf.mxu0
  %v99 = vadd.f32 0.0, %v98
  %v100 = vpop.f32.mrf.mxu0
  %101 = vmatprep.mubr.bf16.mxu0 0
  %102 = vmatmul.mubr.bf16.gmra.mxu0 %v53
  %v103 = vpop.f32.mrf.mxu0
  %v104 = vadd.f32 0.0, %v103
  %v105 = vpop.f32.mrf.mxu0
  %v106 = vpop.f32.mrf.mxu0
  %v107 = vadd.f32 0.0, %v106
  %v108 = vpop.f32.mrf.mxu0
  %109 = vmatprep.mubr.bf16.mxu0 0
  %110 = vmatmul.mubr.bf16.gmra.mxu0 %v56
  %v111 = vpop.f32.mrf.mxu0
  %v112 = vadd.f32 0.0, %v111
  %v113 = vpop.f32.mrf.mxu0
  %v114 = vpop.f32.mrf.mxu0
  %v115 = vadd.f32 0.0, %v114
  %v116 = vpop.f32.mrf.mxu0
  %117 = vmatprep.mubr.bf16.mxu0 0
  %118 = vmatmul.mubr.bf16.gmra.mxu0 %v59
  %v119 = vpop.f32.mrf.mxu0
  %v120 = vadd.f32 0.0, %v119
  %v121 = vpop.f32.mrf.mxu0
  %v122 = vpop.f32.mrf.mxu0
  %v123 = vadd.f32 0.0, %v122
  %v124 = vpop.f32.mrf.mxu0
  %125 = vdwg.mxu0
  %vm126 = vcmask 261120
  %127 = vst.msk [vmem:[%s2] sm:$0xff] %vm126, %v96
  %128 = vst.msk [vmem:[%s2 + $0x8] sm:$0xff] %vm126, %v99
  %129 = vst.msk [vmem:[%s2 + $0x10] sm:$0xff] %vm126, %v104
  %130 = vst.msk [vmem:[%s2 + $0x18] sm:$0xff] %vm126, %v107
  %131 = vst.msk [vmem:[%s2 + $0x20] sm:$0xff] %vm126, %v112
  %132 = vst.msk [vmem:[%s2 + $0x28] sm:$0xff] %vm126, %v115
  %133 = vst.msk [vmem:[%s2 + $0x30] sm:$0xff] %vm126, %v120
  %134 = vst.msk [vmem:[%s2 + $0x38] sm:$0xff] %vm126, %v123
  // Predicated region
  $region10: #{tpu_custom_call.1} parent=0 // pred_check
    _
  $region11: #{tpu_custom_call.1} parent=0 // pred_check_branch
    %136 = sbr.rel (0) target = $region13
  $region12: #{tpu_custom_call.1} parent=0 // pred_region
    _
  $region13: #{tpu_custom_call.1} parent=0 // pred_fallthru
    _
  // Predicated region
  $region14: #{tpu_custom_call.1} parent=0 // pred_check
    _
  $region15: #{tpu_custom_call.1} parent=0 // pred_check_branch
    %138 = sbr.rel (0) target = $region17
  $region16: #{tpu_custom_call.1} parent=0 // pred_region
    _
  $region17: #{tpu_custom_call.1} parent=0 // pred_fallthru
    _

</llo_original>
